<compile_context>
chip_gen: v7x
topology: tpu7x:2x2x1
jax: 0.10.0
libtpu: 0.0.40
codegen_flags: <defaults>
</compile_context>

<pallas_src>
import functools

import numpy as np
import jax
import jax.numpy as jnp
from jax import lax
from jax.experimental import pallas as pl
from jax.experimental.pallas import tpu as pltpu

# GA(3,0,1) basis ordering used by GATr:
#   [1, e0, e1, e2, e3, e01, e02, e03, e12, e13, e23, e012, e013, e023, e123, e0123]
# Components containing the degenerate direction e0 do not contribute to the
# invariant squared norm, hence the 0 entries in the mask.
_INNER_PRODUCT_MASK = np.array(
    [1, 0, 1, 1, 1, 0, 0, 0, 1, 1, 1, 0, 0, 0, 1, 0], dtype=np.float32
)

_MV_EPS = 0.01        # epsilon of EquiLayerNorm (clamp on mean squared norm)
_LN_EPS = 1e-5        # torch.nn.functional.layer_norm default eps

_TARGET_BLOCK_BYTES = 2 * 1024 * 1024    # ~2 MiB of input data per grid step
_VMEM_LIMIT_BYTES = 48 * 1024 * 1024     # safe on v5e/v6e (128 MiB) and v7x (64 MiB)


def _pick_block_rows(n_rows, row_bytes):
    """Largest multiple-of-8 row count whose block stays near the target bytes."""
    rows = max(8, _TARGET_BLOCK_BYTES // max(1, int(row_bytes)))
    rows = int(rows) // 8 * 8
    rows = min(rows, ((int(n_rows) + 7) // 8) * 8)  # never bigger than padded N
    return max(8, rows)


# --------------------------------------------------------------------------
# Kernel bodies
# --------------------------------------------------------------------------
def _mv_normalize_f32(mv, mask, inv_c):
    """Rescale multivectors so that mean_channels |x|^2 == 1 (GA norm)."""
    mvf = mv.astype(jnp.float32)                   # (bn, C*16), lane-dense
    # mean over channels of the masked squared norm == masked row-sum / C
    mean_sq = jnp.sum(mvf * mvf * mask, axis=-1, keepdims=True) * inv_c  # (bn, 1)
    return mvf * lax.rsqrt(jnp.maximum(mean_sq, _MV_EPS))


def _scalar_layernorm_f32(s):
    """Plain LayerNorm over the last dim, no affine params (torch defaults)."""
    sf = s.astype(jnp.float32)                     # (bm, S)
    mean = jnp.mean(sf, axis=-1, keepdims=True)
    cent = sf - mean
    var = jnp.mean(cent * cent, axis=-1, keepdims=True)   # biased variance
    return cent * lax.rsqrt(var + _LN_EPS)


def _fused_kernel(mask_ref, mv_ref, s_ref, mv_out_ref, s_out_ref, *, inv_c):
    mv_out_ref[...] = _mv_normalize_f32(
        mv_ref[...], mask_ref[...], inv_c).astype(mv_out_ref.dtype)
    s_out_ref[...] = _scalar_layernorm_f32(s_ref[...]).astype(s_out_ref.dtype)


def _mv_only_kernel(mask_ref, mv_ref, mv_out_ref, *, inv_c):
    mv_out_ref[...] = _mv_normalize_f32(
        mv_ref[...], mask_ref[...], inv_c).astype(mv_out_ref.dtype)


# --------------------------------------------------------------------------
# Wrapper
# --------------------------------------------------------------------------
def equi_layer_norm(multivectors, scalars=None):
    """Pallas implementation of EquiLayerNorm.forward.

    multivectors: (..., C, 16); scalars: (..., Cs, S) with the same leading dims
    (or None).  Returns (normalized multivectors, normalized scalars) with the
    input shapes/dtypes.
    """
    mv_shape = multivectors.shape
    assert mv_shape[-1] == 16, "multivectors must have 16 GA components"
    C = mv_shape[-2]
    batch = mv_shape[:-2]
    N = int(np.prod(batch)) if batch else 1

    width = C * 16
    mv_flat = multivectors.reshape(N, width)                       # lane-dense
    mask_tiled = jnp.tile(jnp.asarray(_INNER_PRODUCT_MASK), C).reshape(1, width)
    mv_isz = int(jnp.dtype(multivectors.dtype).itemsize)
    compiler_params = pltpu.CompilerParams(
        dimension_semantics=("parallel",),
        vmem_limit_bytes=_VMEM_LIMIT_BYTES,
    )

    # ---- multivector-only path (scalars is None) --------------------------
    if scalars is None:
        block_n = _pick_block_rows(N, width * mv_isz)
        grid_n = pl.cdiv(N, block_n)
        mv_out = pl.pallas_call(
            functools.partial(_mv_only_kernel, inv_c=1.0 / float(C)),
            out_shape=jax.ShapeDtypeStruct((N, width), multivectors.dtype),
            grid_spec=pltpu.PrefetchScalarGridSpec(
                num_scalar_prefetch=0,
                grid=(grid_n,),
                in_specs=[
                    pl.BlockSpec((1, width), lambda i: (0, 0)),        # GA mask
                    pl.BlockSpec((block_n, width), lambda i: (i, 0)),  # mv
                ],
                out_specs=pl.BlockSpec((block_n, width), lambda i: (i, 0)),
            ),
            compiler_params=compiler_params,
            cost_estimate=pl.CostEstimate(
                flops=4 * N * width,
                transcendentals=N,
                bytes_accessed=2 * N * width * mv_isz,
            ),
        )(mask_tiled, mv_flat)
        return mv_out.reshape(mv_shape), None

    # ---- fused path: one grid over batch rows for both branches -----------
    s_shape = scalars.shape
    assert mv_shape[:-2] == s_shape[:-2], "leading batch dims must match"
    Cs, S = s_shape[-2], s_shape[-1]
    s_isz = int(jnp.dtype(scalars.dtype).itemsize)
    s_flat = scalars.reshape(N * Cs, S)                             # sublane-dense

    row_bytes = width * mv_isz + Cs * S * s_isz   # combined bytes per batch row
    block_n = _pick_block_rows(N, row_bytes)
    block_s = block_n * Cs                        # multiple of 8 (block_n is)
    grid_n = pl.cdiv(N, block_n)

    cost = pl.CostEstimate(
        flops=4 * N * width + 6 * N * Cs * S,
        transcendentals=N + N * Cs,
        bytes_accessed=2 * N * width * mv_isz + 2 * N * Cs * S * s_isz,
    )

    mv_out, s_out = pl.pallas_call(
        functools.partial(_fused_kernel, inv_c=1.0 / float(C)),
        out_shape=(
            jax.ShapeDtypeStruct((N, width), multivectors.dtype),
            jax.ShapeDtypeStruct((N * Cs, S), scalars.dtype),
        ),
        grid_spec=pltpu.PrefetchScalarGridSpec(
            num_scalar_prefetch=0,
            grid=(grid_n,),
            in_specs=[
                pl.BlockSpec((1, width), lambda i: (0, 0)),        # GA mask (replicated)
                pl.BlockSpec((block_n, width), lambda i: (i, 0)),  # multivectors
                pl.BlockSpec((block_s, S), lambda i: (i, 0)),      # scalars
            ],
            out_specs=[
                pl.BlockSpec((block_n, width), lambda i: (i, 0)),
                pl.BlockSpec((block_s, S), lambda i: (i, 0)),
            ],
        ),
        compiler_params=compiler_params,
        cost_estimate=cost,
    )(mask_tiled, mv_flat, s_flat)

    return mv_out.reshape(mv_shape), s_out.reshape(s_shape)


# --------------------------------------------------------------------------
# Pure-JAX reference mirroring the PyTorch semantics
# --------------------------------------------------------------------------
def _reference(mv, s):
    mask = jnp.asarray(_INNER_PRODUCT_MASK)
    sq = jnp.sum(mv * mv * mask, axis=-1)
    mean_sq = jnp.maximum(jnp.mean(sq, axis=-1, keepdims=True), _MV_EPS)
    mv_out = mv / jnp.sqrt(mean_sq)[..., None]
    mean = jnp.mean(s, axis=-1, keepdims=True)
    var = jnp.mean((s - mean) ** 2, axis=-1, keepdims=True)
    s_out = (s - mean) / jnp.sqrt(var + _LN_EPS)
    return mv_out, s_out


if __name__ == "__main__":
    key = jax.random.PRNGKey(0)
    k_mv, k_s = jax.random.split(key)

    batch, items, channels, scalars_dim = 2, 8, 4, 32
    multivectors = jax.random.normal(
        k_mv, (batch, items, channels, 16), dtype=jnp.float32
    )
    scalars = jax.random.normal(
        k_s, (batch, items, channels, scalars_dim), dtype=jnp.float32
    )

    mv_out, s_out = equi_layer_norm(multivectors, scalars)
    jax.block_until_ready(mv_out)
    jax.block_until_ready(s_out)

    mv_ref, s_ref = _reference(multivectors, scalars)
    assert mv_out.shape == multivectors.shape and s_out.shape == scalars.shape
    np.testing.assert_allclose(np.asarray(mv_out), np.asarray(mv_ref), rtol=1e-5, atol=1e-5)
    np.testing.assert_allclose(np.asarray(s_out), np.asarray(s_ref), rtol=1e-5, atol=1e-5)

    # mv-only path (scalars=None) also exercised once.
    mv_only, none_s = equi_layer_norm(multivectors, None)
    jax.block_until_ready(mv_only)
    assert none_s is None
    np.testing.assert_allclose(np.asarray(mv_only), np.asarray(mv_ref), rtol=1e-5, atol=1e-5)

    print("KERNEL_OK")
</pallas_src>

<mosaic_0001>
module attributes {stable_mosaic.version = 11 : i64} {
  func.func @_fused_kernel(%arg0: i32, %arg1: memref<1x64xf32, #tpu.memory_space<vmem>>, %arg2: memref<16x64xf32, #tpu.memory_space<vmem>>, %arg3: memref<64x32xf32, #tpu.memory_space<vmem>>, %arg4: memref<16x64xf32, #tpu.memory_space<vmem>>, %arg5: memref<64x32xf32, #tpu.memory_space<vmem>>) attributes {dimension_semantics = [#tpu.dimension_semantics<parallel>], iteration_bounds = array<i64: 1>, scalar_prefetch = 0 : i64, scratch_operands = 0 : i64, tpu.core_type = #tpu.core_type<tc>, window_params = [{pipeline_mode = #tpu.pipeline_mode<synchronous>, transform_indices = @transform_0, window_bounds = array<i64: 1, 64>}, {transform_indices = @transform_1, window_bounds = array<i64: 16, 64>}, {transform_indices = @transform_2, window_bounds = array<i64: 64, 32>}, {transform_indices = @transform_3, window_bounds = array<i64: 16, 64>}, {transform_indices = @transform_4, window_bounds = array<i64: 64, 32>}]} {
    %c0 = arith.constant 0 : index
    %c0_0 = arith.constant 0 : index
    %0 = vector.load %arg2[%c0, %c0_0] : memref<16x64xf32, #tpu.memory_space<vmem>>, vector<16x64xf32>
    %c0_1 = arith.constant 0 : index
    %c0_2 = arith.constant 0 : index
    %1 = vector.load %arg1[%c0_1, %c0_2] : memref<1x64xf32, #tpu.memory_space<vmem>>, vector<1x64xf32>
    %2 = arith.mulf %0, %0 : vector<16x64xf32>
    %3 = vector.broadcast %1 : vector<1x64xf32> to vector<16x64xf32>
    %4 = arith.mulf %2, %3 : vector<16x64xf32>
    %cst = arith.constant dense<0.000000e+00> : vector<16xf32>
    %5 = vector.multi_reduction <add>, %4, %cst [1] : vector<16x64xf32> to vector<16xf32>
    %6 = vector.shape_cast %5 : vector<16xf32> to vector<16x1xf32>
    %cst_3 = arith.constant 2.500000e-01 : f32
    %7 = vector.broadcast %cst_3 : f32 to vector<16x1xf32>
    %8 = arith.mulf %6, %7 : vector<16x1xf32>
    %cst_4 = arith.constant 0.00999999977 : f32
    %9 = vector.broadcast %cst_4 : f32 to vector<16x1xf32>
    %10 = arith.maximumf %8, %9 : vector<16x1xf32>
    %11 = math.rsqrt %10 : vector<16x1xf32>
    %12 = vector.broadcast %11 : vector<16x1xf32> to vector<16x64xf32>
    %13 = arith.mulf %0, %12 : vector<16x64xf32>
    %c0_5 = arith.constant 0 : index
    %c0_6 = arith.constant 0 : index
    %14 = vector.load %arg4[%c0_5, %c0_6] : memref<16x64xf32, #tpu.memory_space<vmem>>, vector<16x64xf32>
    tpu.vector_store %arg4[%c0_5, %c0_6], %13 {strides = array<i32>} : memref<16x64xf32, #tpu.memory_space<vmem>>, vector<16x64xf32>,
    %c0_7 = arith.constant 0 : index
    %c0_8 = arith.constant 0 : index
    %15 = vector.load %arg3[%c0_7, %c0_8] : memref<64x32xf32, #tpu.memory_space<vmem>>, vector<64x32xf32>
    %cst_9 = arith.constant dense<0.000000e+00> : vector<64xf32>
    %16 = vector.multi_reduction <add>, %15, %cst_9 [1] : vector<64x32xf32> to vector<64xf32>
    %17 = vector.shape_cast %16 : vector<64xf32> to vector<64x1xf32>
    %cst_10 = arith.constant 3.200000e+01 : f32
    %18 = vector.broadcast %cst_10 : f32 to vector<64x1xf32>
    %19 = arith.divf %17, %18 : vector<64x1xf32>
    %20 = vector.broadcast %19 : vector<64x1xf32> to vector<64x32xf32>
    %21 = arith.subf %15, %20 : vector<64x32xf32>
    %22 = arith.mulf %21, %21 : vector<64x32xf32>
    %cst_11 = arith.constant dense<0.000000e+00> : vector<64xf32>
    %23 = vector.multi_reduction <add>, %22, %cst_11 [1] : vector<64x32xf32> to vector<64xf32>
    %24 = vector.shape_cast %23 : vector<64xf32> to vector<64x1xf32>
    %cst_12 = arith.constant 3.200000e+01 : f32
    %25 = vector.broadcast %cst_12 : f32 to vector<64x1xf32>
    %26 = arith.divf %24, %25 : vector<64x1xf32>
    %cst_13 = arith.constant 9.99999974E-6 : f32
    %27 = vector.broadcast %cst_13 : f32 to vector<64x1xf32>
    %28 = arith.addf %26, %27 : vector<64x1xf32>
    %29 = math.rsqrt %28 : vector<64x1xf32>
    %30 = vector.broadcast %29 : vector<64x1xf32> to vector<64x32xf32>
    %31 = arith.mulf %21, %30 : vector<64x32xf32>
    %c0_14 = arith.constant 0 : index
    %c0_15 = arith.constant 0 : index
    %32 = vector.load %arg5[%c0_14, %c0_15] : memref<64x32xf32, #tpu.memory_space<vmem>>, vector<64x32xf32>
    tpu.vector_store %arg5[%c0_14, %c0_15], %31 {strides = array<i32>} : memref<64x32xf32, #tpu.memory_space<vmem>>, vector<64x32xf32>,
    return
  }
  func.func @transform_0(%arg0: i32) -> (i32, i32) {
    %c0_i32 = arith.constant 0 : i32
    %c0_i32_0 = arith.constant 0 : i32
    %c0_i32_1 = arith.constant 0 : i32
    return %c0_i32, %c0_i32_0 : i32, i32
  }
  func.func @transform_1(%arg0: i32) -> (i32, i32) {
    %c0_i32 = arith.constant 0 : i32
    %c0_i32_0 = arith.constant 0 : i32
    return %arg0, %c0_i32 : i32, i32
  }
  func.func @transform_2(%arg0: i32) -> (i32, i32) {
    %c0_i32 = arith.constant 0 : i32
    %c0_i32_0 = arith.constant 0 : i32
    return %arg0, %c0_i32 : i32, i32
  }
  func.func @transform_3(%arg0: i32) -> (i32, i32) {
    %c0_i32 = arith.constant 0 : i32
    %c0_i32_0 = arith.constant 0 : i32
    return %arg0, %c0_i32 : i32, i32
  }
  func.func @transform_4(%arg0: i32) -> (i32, i32) {
    %c0_i32 = arith.constant 0 : i32
    %c0_i32_0 = arith.constant 0 : i32
    return %arg0, %c0_i32 : i32, i32
  }
}

</mosaic_0001>

<llo_original>
// kernel: tpu_custom_call.1
$region0: #{tpu_custom_call.1}
  #allocation0 [shape = 'u32[]', space=smem, size = 0x4, offset = 0x4, fixed_abs, tag = 'smem constant byte address 0x4 - core index']
  #allocation1 [shape = 'u32[144,128]{1,0:T(1,128)}', space=vmem, size = 0x12000, scoped, tag = 'internal scratch']
  %s0 = inlined_call_operand.vmem [shape: f32[1,64], index: 0, kind: input, shape index: {}]
  %s1 = inlined_call_operand.vmem [shape: f32[16,64], index: 1, kind: input, shape index: {}]
  %s2 = inlined_call_operand.vmem [shape: f32[64,32], index: 2, kind: input, shape index: {}]
  %s3 = inlined_call_operand.hbm [shape: f32[16,64], index: 3, kind: output, shape index: {0}]
  %s4 = inlined_call_operand.vmem [shape: f32[64,32], index: 4, kind: output, shape index: {1}]
  %5 = xla_tuple %s3, %s4
  %s6 = sld [smem:[#allocation0]]
  $region30: #{tpu_custom_call.1} parent=0
    _
  %s8 = ssub.s32 1, %s6
  %s9 = scalar_select 0, %s8, %s6
  $region1: #{tpu_custom_call.1} parent=0
    #allocation2 [shape = 'u8[8192]{0}', space=vmem, size = 0x2000, scoped, tag = 'output window, operand 0, single buffered']
    #allocation3 [shape = 's32[1]{0}', space=sflag, size = 0x4, scoped, tag = 'scoped memory for tpu_custom_call.1']
    %10 = vsyncpa [#allocation3], 0
    // Predicated region
    $region2: #{tpu_custom_call.1} parent=1 // pred_check
      _
    $region3: #{tpu_custom_call.1} parent=1 // pred_check_branch
      %12 = sbr.rel (0) target = $region5
    $region4: #{tpu_custom_call.1} parent=1 // pred_region
      _
    $region5: #{tpu_custom_call.1} parent=1 // pred_fallthru
      _
    // Predicated region
    $region6: #{tpu_custom_call.1} parent=1 // pred_check
      _
    $region7: #{tpu_custom_call.1} parent=1 // pred_check_branch
      %14 = sbr.rel (0) target = $region9
    $region8: #{tpu_custom_call.1} parent=1 // pred_region
      _
    $region9: #{tpu_custom_call.1} parent=1 // pred_fallthru
      _
    // Predicated region
    $region10: #{tpu_custom_call.1} parent=1 // pred_check
      _
    $region11: #{tpu_custom_call.1} parent=1 // pred_check_branch
      %16 = sbr.rel (0) target = $region13
    $region12: #{tpu_custom_call.1} parent=1 // pred_region
      _
    $region13: #{tpu_custom_call.1} parent=1 // pred_fallthru
      _
    %v17 = vld [vmem:[%s1] sm:$0xff]
    %v18 = vld [vmem:[%s1 + $0x8] sm:$0xff]
    %v19 = vld [vmem:[%s0] sm:$0x1]
    %v20 = vmul.f32 %v17, %v17
    %v21 = vmul.f32 %v18, %v18
    %v23 = vlaneseq
    %v24 = vshrl.u32 %v23, 7
    %v25 = vsub.s32 0, %v24
    %v26 = vrot.slane %v19, %v25
    %v28 = vmul.f32 %v20, %v26
    %v29 = vmul.f32 %v21, %v26
    %vm30 = vcmask 523264
    %v31 = vsel %vm30, %v28, 0.0
    %32 = vadd.xlane.f32.xlu0 %v31
    %v33 = vpop.xlane.xlu0 %32
    %v34 = vsel %vm30, %v29, 0.0
    %35 = vadd.xlane.f32.xlu0 %v34
    %v36 = vpop.xlane.xlu0 %35
    %v37 = vmul.f32 %v33, 0.25
    %v38 = vmul.f32 %v36, 0.25
    %v39 = vmax.f32 %v37, 0.01
    %v40 = vmax.f32 %v38, 0.01
    %v41 = vrsqrt.pop %v39
    %v42 = vrsqrt.pop %v40
    %v43 = vmul.f32 %v17, %v41
    %v44 = vmul.f32 %v18, %v42
    %45 = vst.msk [vmem:[#allocation2] sm:$0xff] %vm30, %v43
    %46 = vst.msk [vmem:[#allocation2 + $0x8] sm:$0xff] %vm30, %v44
    %v47 = vld [vmem:[%s2] sm:$0xff]
    %v48 = vld [vmem:[%s2 + $0x8] sm:$0xff]
    %v49 = vld [vmem:[%s2 + $0x10] sm:$0xff]
    %v50 = vld [vmem:[%s2 + $0x18] sm:$0xff]
    %v51 = vld [vmem:[%s2 + $0x20] sm:$0xff]
    %v52 = vld [vmem:[%s2 + $0x28] sm:$0xff]
    %v53 = vld [vmem:[%s2 + $0x30] sm:$0xff]
    %v54 = vld [vmem:[%s2 + $0x38] sm:$0xff]
    %vm55 = vcmask 261120
    %v56 = vsel %vm55, %v47, 0.0
    %57 = vadd.xlane.f32.xlu0 %v56
    %v58 = vpop.xlane.xlu0 %57
    %v59 = vsel %vm55, %v48, 0.0
    %60 = vadd.xlane.f32.xlu0 %v59
    %v61 = vpop.xlane.xlu0 %60
    %v62 = vsel %vm55, %v49, 0.0
    %63 = vadd.xlane.f32.xlu0 %v62
    %v64 = vpop.xlane.xlu0 %63
    %v65 = vsel %vm55, %v50, 0.0
    %66 = vadd.xlane.f32.xlu0 %v65
    %v67 = vpop.xlane.xlu0 %66
    %v68 = vsel %vm55, %v51, 0.0
    %69 = vadd.xlane.f32.xlu0 %v68
    %v70 = vpop.xlane.xlu0 %69
    %v71 = vsel %vm55, %v52, 0.0
    %72 = vadd.xlane.f32.xlu0 %v71
    %v73 = vpop.xlane.xlu0 %72
    %v74 = vsel %vm55, %v53, 0.0
    %75 = vadd.xlane.f32.xlu0 %v74
    %v76 = vpop.xlane.xlu0 %75
    %v77 = vsel %vm55, %v54, 0.0
    %78 = vadd.xlane.f32.xlu0 %v77
    %v79 = vpop.xlane.xlu0 %78
    %v80 = vrcp.pop 32.0
    %v81 = vmul.f32 %v58, %v80
    %v82 = vmul.f32 %v61, %v80
    %v83 = vmul.f32 %v64, %v80
    %v84 = vmul.f32 %v67, %v80
    %v85 = vmul.f32 %v70, %v80
    %v86 = vmul.f32 %v73, %v80
    %v87 = vmul.f32 %v76, %v80
    %v88 = vmul.f32 %v79, %v80
    %v89 = vsub.f32 %v47, %v81
    %v90 = vsub.f32 %v48, %v82
    %v91 = vsub.f32 %v49, %v83
    %v92 = vsub.f32 %v50, %v84
    %v93 = vsub.f32 %v51, %v85
    %v94 = vsub.f32 %v52, %v86
    %v95 = vsub.f32 %v53, %v87
    %v96 = vsub.f32 %v54, %v88
    %v97 = vmul.f32 %v89, %v89
    %v98 = vmul.f32 %v90, %v90
    %v99 = vmul.f32 %v91, %v91
    %v100 = vmul.f32 %v92, %v92
    %v101 = vmul.f32 %v93, %v93
    %v102 = vmul.f32 %v94, %v94
    %v103 = vmul.f32 %v95, %v95
    %v104 = vmul.f32 %v96, %v96
    %v105 = vsel %vm55, %v97, 0.0
    %106 = vadd.xlane.f32.xlu0 %v105
    %v107 = vpop.xlane.xlu0 %106
    %v108 = vsel %vm55, %v98, 0.0
    %109 = vadd.xlane.f32.xlu0 %v108
    %v110 = vpop.xlane.xlu0 %109
    %v111 = vsel %vm55, %v99, 0.0
    %112 = vadd.xlane.f32.xlu0 %v111
    %v113 = vpop.xlane.xlu0 %112
    %v114 = vsel %vm55, %v100, 0.0
    %115 = vadd.xlane.f32.xlu0 %v114
    %v116 = vpop.xlane.xlu0 %115
    %v117 = vsel %vm55, %v101, 0.0
    %118 = vadd.xlane.f32.xlu0 %v117
    %v119 = vpop.xlane.xlu0 %118
    %v120 = vsel %vm55, %v102, 0.0
    %121 = vadd.xlane.f32.xlu0 %v120
    %v122 = vpop.xlane.xlu0 %121
    %v123 = vsel %vm55, %v103, 0.0
    %124 = vadd.xlane.f32.xlu0 %v123
    %v125 = vpop.xlane.xlu0 %124
    %v126 = vsel %vm55, %v104, 0.0
    %127 = vadd.xlane.f32.xlu0 %v126
    %v128 = vpop.xlane.xlu0 %127
    %v129 = vmul.f32 %v107, %v80
    %v130 = vmul.f32 %v110, %v80
    %v131 = vmul.f32 %v113, %v80
    %v132 = vmul.f32 %v116, %v80
    %v133 = vmul.f32 %v119, %v80
    %v134 = vmul.f32 %v122, %v80
    %v135 = vmul.f32 %v125, %v80
    %v136 = vmul.f32 %v128, %v80
    %v137 = vadd.f32 %v129, 1e-05
    %v138 = vadd.f32 %v130, 1e-05
    %v139 = vadd.f32 %v131, 1e-05
    %v140 = vadd.f32 %v132, 1e-05
    %v141 = vadd.f32 %v133, 1e-05
    %v142 = vadd.f32 %v134, 1e-05
    %v143 = vadd.f32 %v135, 1e-05
    %v144 = vadd.f32 %v136, 1e-05
    %v145 = vrsqrt.pop %v137
    %v146 = vrsqrt.pop %v138
    %v147 = vrsqrt.pop %v139
    %v148 = vrsqrt.pop %v140
    %v149 = vrsqrt.pop %v141
    %v150 = vrsqrt.pop %v142
    %v151 = vrsqrt.pop %v143
    %v152 = vrsqrt.pop %v144
    %v153 = vmul.f32 %v89, %v145
    %v154 = vmul.f32 %v90, %v146
    %v155 = vmul.f32 %v91, %v147
    %v156 = vmul.f32 %v92, %v148
    %v157 = vmul.f32 %v93, %v149
    %v158 = vmul.f32 %v94, %v150
    %v159 = vmul.f32 %v95, %v151
    %v160 = vmul.f32 %v96, %v152
    %161 = vst.msk [vmem:[%s4] sm:$0xff] %vm55, %v153
    %162 = vst.msk [vmem:[%s4 + $0x8] sm:$0xff] %vm55, %v154
    %163 = vst.msk [vmem:[%s4 + $0x10] sm:$0xff] %vm55, %v155
    %164 = vst.msk [vmem:[%s4 + $0x18] sm:$0xff] %vm55, %v156
    %165 = vst.msk [vmem:[%s4 + $0x20] sm:$0xff] %vm55, %v157
    %166 = vst.msk [vmem:[%s4 + $0x28] sm:$0xff] %vm55, %v158
    %167 = vst.msk [vmem:[%s4 + $0x30] sm:$0xff] %vm55, %v159
    %168 = vst.msk [vmem:[%s4 + $0x38] sm:$0xff] %vm55, %v160
    // Predicated region
    $region14: #{tpu_custom_call.1} parent=1 // pred_check
      _
    $region15: #{tpu_custom_call.1} parent=1 // pred_check_branch
      %170 = sbr.rel (0) target = $region17
    $region16: #{tpu_custom_call.1} parent=1 // pred_region
      %s172 = ssub.s32 256, 256
      %173 = vsyncadd [#allocation3], %s172
      %s174 = sshll.u32 [#allocation2], 4
      %s175 = int_to_ptr.vmem [resolvable:$true] %s174
      %180 = dma.vmem_to_hbm [thread:$0]  %s175, 256, %s3, [#allocation3], 128, 128, 8
    $region17: #{tpu_custom_call.1} parent=1 // pred_fallthru
      _
    // Predicated region
    $region18: #{tpu_custom_call.1} parent=1 // pred_check
      _
    $region19: #{tpu_custom_call.1} parent=1 // pred_check_branch
      %182 = sbr.rel (0) target = $region21
    $region20: #{tpu_custom_call.1} parent=1 // pred_region
      _
    $region21: #{tpu_custom_call.1} parent=1 // pred_fallthru
      _
    // Predicated region
    $region22: #{tpu_custom_call.1} parent=1 // pred_check
      _
    $region23: #{tpu_custom_call.1} parent=1 // pred_check_branch
      %184 = sbr.rel (0) target = $region25
    $region24: #{tpu_custom_call.1} parent=1 // pred_region
      %185 = dma.done [#allocation3], 256
    $region25: #{tpu_custom_call.1} parent=1 // pred_fallthru
      _
    // Predicated region
    $region26: #{tpu_custom_call.1} parent=1 // pred_check
      _
    $region27: #{tpu_custom_call.1} parent=1 // pred_check_branch
      %187 = sbr.rel (0) target = $region29
    $region28: #{tpu_custom_call.1} parent=1 // pred_region
      _
    $region29: #{tpu_custom_call.1} parent=1 // pred_fallthru
      _
    %188 = vsyncpa [#allocation3], 1

</llo_original>
